<compile_context>
chip_gen: v6e
topology: v6e:2x2x1
jax: 0.10.0
libtpu: 0.0.40
codegen_flags: <defaults>
</compile_context>

<pallas_src>
import functools

import jax
import jax.numpy as jnp
from jax.experimental import pallas as pl
from jax.experimental.pallas import tpu as pltpu


def _mask_get_kernel(x_ref, o_ref, pad_ref, *, K, P, H, W, Ho, Wo):
    # x_ref  : (nb, Cin, H, W)   unpadded input block (VMEM)
    # o_ref  : (nb, Ho, Wo)      binary mask plane    (VMEM)
    # pad_ref: (nb, Hp, Wp) f32  zero-padded channel-sum scratch (VMEM)
    nb = x_ref.shape[0]

    # (1) Channel reduction ONCE (all-ones conv weight => plain sum over Cin).
    plane = jnp.sum(x_ref[...].astype(jnp.float32), axis=1)       # (nb, H, W)

    # (2) Fused zero padding: zeros contribute nothing to the window sum, so
    #     build the padded plane directly in VMEM scratch (no jnp.pad HBM pass).
    if P > 0:
        pad_ref[...] = jnp.zeros_like(pad_ref)
        pad_ref[:, P:P + H, P:P + W] = plane
        padded = pad_ref[...]                                      # (nb, Hp, Wp)
    else:
        padded = plane

    # (3) Separable K-tap box sum: K horizontal + K vertical shifted adds
    #     (Cin + 2K vector adds per output element instead of K*K*Cin).
    hsum = padded[:, :, 0:Wo]
    for kw in range(1, K):
        hsum = hsum + padded[:, :, kw:kw + Wo]                     # (nb, Hp, Wo)
    acc = hsum[:, 0:Ho, :]
    for kh in range(1, K):
        acc = acc + hsum[:, kh:kh + Ho, :]                         # (nb, Ho, Wo)

    # (4) Threshold: exactly mirrors PyTorch's `output_mask == 0` (f32 accum).
    # TODO(synk): pack Ho*Wo into the lane dim (lane-dense 128+ stores) once
    # the sublane->lane shape_cast path is verified on all target gens; kept
    # the plain (Ho, Wo) store for compile safety (HBM block is contiguous).
    o_ref[...] = (acc != 0.0).astype(o_ref.dtype)


def mask_get(x, *, out_channels, kernel_size, stride=1, padding=0,
             dilation=1, batch_block=None):
    """Pallas equivalent of MaskGet.forward for an NCHW float input."""
    # TODO(synk): only the stride=1 / dilation=1 path is implemented in-kernel.
    assert stride == 1 and dilation == 1
    N, C, H, W = x.shape
    K = kernel_size
    P = padding
    Ho = H + 2 * P - K + 1
    Wo = W + 2 * P - K + 1
    Hp, Wp = H + 2 * P, W + 2 * P

    # Batch blocking: amortize per-grid-step overhead while still exposing at
    # least two parallel grid steps (megacore / v7x dual-TC sharding).
    if batch_block is None:
        batch_block = 1 if N <= 2 else min(4, N)
    nb = batch_block
    grid = (pl.cdiv(N, nb),)

    kernel = functools.partial(
        _mask_get_kernel, K=K, P=P, H=H, W=W, Ho=Ho, Wo=Wo)

    plane = pl.pallas_call(
        kernel,
        out_shape=jax.ShapeDtypeStruct((N, Ho, Wo), x.dtype),
        grid=grid,
        in_specs=[pl.BlockSpec((nb, C, H, W), lambda n: (n, 0, 0, 0))],
        out_specs=pl.BlockSpec((nb, Ho, Wo), lambda n: (n, 0, 0)),
        scratch_shapes=[pltpu.VMEM((nb, Hp, Wp), jnp.float32)],
        compiler_params=pltpu.CompilerParams(
            dimension_semantics=("parallel",)),
    )(x)

    # All output channels of the all-ones conv are identical: broadcast the
    # single plane outside the kernel (fuses/aliases downstream instead of
    # writing Cout identical planes to HBM from the kernel).
    return jnp.broadcast_to(plane[:, None, :, :], (N, out_channels, Ho, Wo))


if __name__ == "__main__":
    key = jax.random.PRNGKey(0)
    N, C, H, W = 2, 4, 16, 16
    out_channels, kernel_size, padding = 4, 3, 1

    # Deterministic binary hole mask (typical MaskGet input).
    x = (jax.random.uniform(key, (N, C, H, W)) > 0.5).astype(jnp.float32)

    out = mask_get(x, out_channels=out_channels, kernel_size=kernel_size,
                   stride=1, padding=padding)
    out = jax.block_until_ready(out)
    assert out.shape == (N, out_channels, H, W)
    assert out.dtype == x.dtype

    # Reference check in plain JAX (all-ones conv == windowed channel sum).
    xp = jnp.pad(x, ((0, 0), (0, 0), (padding, padding), (padding, padding)))
    ref_acc = jnp.zeros((N, H, W), jnp.float32)
    for kh in range(kernel_size):
        for kw in range(kernel_size):
            ref_acc = ref_acc + jnp.sum(
                xp[:, :, kh:kh + H, kw:kw + W], axis=1)
    ref = jnp.broadcast_to(
        (ref_acc != 0.0).astype(x.dtype)[:, None], out.shape)
    assert bool(jnp.all(out == ref))
    print("KERNEL_OK")
</pallas_src>

<mosaic_0001>
module attributes {stable_mosaic.version = 11 : i64} {
  func.func @_mask_get_kernel(%arg0: i32, %arg1: memref<1x4x16x16xf32, #tpu.memory_space<vmem>>, %arg2: memref<1x16x16xf32, #tpu.memory_space<vmem>>, %arg3: memref<1x18x18xf32, #tpu.memory_space<vmem>>) attributes {dimension_semantics = [#tpu.dimension_semantics<parallel>], iteration_bounds = array<i64: 2>, scalar_prefetch = 0 : i64, scratch_operands = 1 : i64, tpu.core_type = #tpu.core_type<tc>, window_params = [{transform_indices = @transform_0, window_bounds = array<i64: 1, 4, 16, 16>}, {transform_indices = @transform_1, window_bounds = array<i64: 1, 16, 16>}]} {
    %c0 = arith.constant 0 : index
    %c0_0 = arith.constant 0 : index
    %c0_1 = arith.constant 0 : index
    %c0_2 = arith.constant 0 : index
    %0 = vector.load %arg1[%c0, %c0_0, %c0_1, %c0_2] : memref<1x4x16x16xf32, #tpu.memory_space<vmem>>, vector<1x4x16x16xf32>
    %cst = arith.constant dense<0.000000e+00> : vector<1x16x16xf32>
    %1 = vector.multi_reduction <add>, %0, %cst [1] : vector<1x4x16x16xf32> to vector<1x16x16xf32>
    %cst_3 = arith.constant 0.000000e+00 : f32
    %2 = vector.broadcast %cst_3 : f32 to vector<1x18x18xf32>
    %c0_4 = arith.constant 0 : index
    %c0_5 = arith.constant 0 : index
    %c0_6 = arith.constant 0 : index
    %3 = vector.load %arg3[%c0_4, %c0_5, %c0_6] : memref<1x18x18xf32, #tpu.memory_space<vmem>>, vector<1x18x18xf32>
    tpu.vector_store %arg3[%c0_4, %c0_5, %c0_6], %2 {strides = array<i32>} : memref<1x18x18xf32, #tpu.memory_space<vmem>>, vector<1x18x18xf32>,
    %c0_7 = arith.constant 0 : index
    %c1 = arith.constant 1 : index
    %c1_8 = arith.constant 1 : index
    %4 = vector.load %arg3[%c0_7, %c1, %c1_8] : memref<1x18x18xf32, #tpu.memory_space<vmem>>, vector<1x16x16xf32>
    tpu.vector_store %arg3[%c0_7, %c1, %c1_8], %1 {strides = array<i32>} : memref<1x18x18xf32, #tpu.memory_space<vmem>>, vector<1x16x16xf32>,
    %c0_9 = arith.constant 0 : index
    %c0_10 = arith.constant 0 : index
    %c0_11 = arith.constant 0 : index
    %5 = vector.load %arg3[%c0_9, %c0_10, %c0_11] : memref<1x18x18xf32, #tpu.memory_space<vmem>>, vector<1x18x18xf32>
    %6 = vector.extract_strided_slice %5 {offsets = [0, 0, 0], sizes = [1, 18, 16], strides = [1, 1, 1]} : vector<1x18x18xf32> to vector<1x18x16xf32>
    %7 = vector.extract_strided_slice %5 {offsets = [0, 0, 1], sizes = [1, 18, 16], strides = [1, 1, 1]} : vector<1x18x18xf32> to vector<1x18x16xf32>
    %8 = arith.addf %6, %7 : vector<1x18x16xf32>
    %9 = vector.extract_strided_slice %5 {offsets = [0, 0, 2], sizes = [1, 18, 16], strides = [1, 1, 1]} : vector<1x18x18xf32> to vector<1x18x16xf32>
    %10 = arith.addf %8, %9 : vector<1x18x16xf32>
    %11 = vector.extract_strided_slice %10 {offsets = [0, 0, 0], sizes = [1, 16, 16], strides = [1, 1, 1]} : vector<1x18x16xf32> to vector<1x16x16xf32>
    %12 = vector.extract_strided_slice %10 {offsets = [0, 1, 0], sizes = [1, 16, 16], strides = [1, 1, 1]} : vector<1x18x16xf32> to vector<1x16x16xf32>
    %13 = arith.addf %11, %12 : vector<1x16x16xf32>
    %14 = vector.extract_strided_slice %10 {offsets = [0, 2, 0], sizes = [1, 16, 16], strides = [1, 1, 1]} : vector<1x18x16xf32> to vector<1x16x16xf32>
    %15 = arith.addf %13, %14 : vector<1x16x16xf32>
    %cst_12 = arith.constant 0.000000e+00 : f32
    %16 = vector.broadcast %cst_12 : f32 to vector<1x16x16xf32>
    %17 = arith.cmpf one, %15, %16 : vector<1x16x16xf32>
    %18 = arith.extui %17 : vector<1x16x16xi1> to vector<1x16x16xi32>
    %19 = arith.sitofp %18 : vector<1x16x16xi32> to vector<1x16x16xf32>
    %c0_13 = arith.constant 0 : index
    %c0_14 = arith.constant 0 : index
    %c0_15 = arith.constant 0 : index
    %20 = vector.load %arg2[%c0_13, %c0_14, %c0_15] : memref<1x16x16xf32, #tpu.memory_space<vmem>>, vector<1x16x16xf32>
    tpu.vector_store %arg2[%c0_13, %c0_14, %c0_15], %19 {strides = array<i32>} : memref<1x16x16xf32, #tpu.memory_space<vmem>>, vector<1x16x16xf32>,
    return
  }
  func.func @transform_0(%arg0: i32) -> (i32, i32, i32, i32) {
    %c0_i32 = arith.constant 0 : i32
    %c0_i32_0 = arith.constant 0 : i32
    %c0_i32_1 = arith.constant 0 : i32
    %c0_i32_2 = arith.constant 0 : i32
    return %arg0, %c0_i32, %c0_i32_0, %c0_i32_1 : i32, i32, i32, i32
  }
  func.func @transform_1(%arg0: i32) -> (i32, i32, i32) {
    %c0_i32 = arith.constant 0 : i32
    %c0_i32_0 = arith.constant 0 : i32
    %c0_i32_1 = arith.constant 0 : i32
    return %arg0, %c0_i32, %c0_i32_0 : i32, i32, i32
  }
}

</mosaic_0001>

<llo_original>
// kernel: tpu_custom_call.1
$region0: #{tpu_custom_call.1}
  #allocation0 [shape = 'u32[]', space=smem, size = 0x4, offset = 0x4, fixed_abs, tag = 'smem constant byte address 0x4 - core index']
  #allocation1 [shape = 'u32[144,128]{1,0:T(1,128)}', space=vmem, size = 0x12000, scoped, tag = 'internal scratch']
  #allocation2 [shape = 'f32[1,18,18]{2,1,0:T(8,128)}', space=vmem, size = 0x3000, scoped, tag = 'scratch operand']
  %s0 = inlined_call_operand.hbm [shape: f32[2,4,16,16], index: 0, kind: input, shape index: {}]
  %s1 = inlined_call_operand.hbm [shape: f32[2,16,16], index: 1, kind: output, shape index: {}]
  %s2 = sld [smem:[#allocation0]]
  $region41: #{tpu_custom_call.1} parent=0
    _
  %s4 = ssub.s32 1, %s2
  %s5 = scalar_select 0, %s4, %s2
  $region1: #{tpu_custom_call.1} parent=0
    #allocation3 [shape = 'u8[65536]{0}', space=vmem, size = 0x10000, scoped, tag = 'input window, operand 0']
    #allocation4 [shape = 's32[2]{0}', space=sflag, size = 0x8, scoped, tag = 'scoped memory for tpu_custom_call.1']
    #allocation5 [shape = 's32[2]{0}', space=sflag, size = 0x8, scoped, tag = 'scoped memory for tpu_custom_call.1']
    #allocation6 [shape = 'u8[16384]{0}', space=vmem, size = 0x4000, scoped, tag = 'output window, operand 0']
    %6 = vsyncpa [#allocation4], 0
    %s7 = scalar_lea.sflag [#allocation4], 1
    %8 = vsyncpa %s7, 0
    %9 = vsyncpa [#allocation5], 0
    %s10 = scalar_lea.sflag [#allocation5], 1
    %11 = vsyncpa %s10, 0
    loop: start=0, step=1, limit=4
    $region2: #{tpu_custom_call.1} parent=1 // loop_pre_header
      _
    $region3: #{tpu_custom_call.1} parent=1 // loop_header
      %s13 = sphi 0, %s17
      %p14 = scmp.ge.s32.totalorder %s13, 4
      %s23 = sphi 0, %s25
      %s26 = sphi 0, %s23
      %s27 = sphi 0, %s26
      %s43 = sphi 0, %s27
      %s49 = sphi 0, %s51
      %s52 = sphi 0, %s49
      %s53 = sphi 0, %s52
      %s69 = sphi 0, %s53
    $region4: #{tpu_custom_call.1} parent=1 // loop_header_branch
      %16 = sbr.rel (%p14) target = $region8
    $region5: #{tpu_custom_call.1} parent=1 // loop_body
      %s18 = ssub.s32 %s13, 1
      %s19 = ssub.s32 %s13, 2
      %s20 = sadd.s32 %s13, 1
      %s21 = ssub.s32 %s13, %s20
      %p22 = scmp.eq.s32.totalorder %s21, 0
      %s24 = sadd.s32 %s23, 1
      %s25 = scalar_select %p22, %s23, %s24
      %p28 = pneg %p22
      %p29 = scmp.eq.s32.totalorder %s13, 1
      %p30 = por %p28, %p29
      %p31 = scmp.ne.s32.totalorder %s23, %s26
      %p32 = scmp.eq.s32.totalorder %s13, 0
      %p33 = por %p31, %p32
      %p34 = scmp.ne.s32.totalorder %s23, %s26
      %p35 = scmp.eq.s32.totalorder %s18, 1
      %p36 = por %p34, %p35
      %p37 = scmp.ne.s32.totalorder %s26, %s27
      %p38 = scmp.eq.s32.totalorder %s18, 0
      %p39 = por %p37, %p38
      %p40 = scmp.ne.s32.totalorder %s26, %s27
      %p41 = scmp.eq.s32.totalorder %s19, 1
      %p42 = por %p40, %p41
      %p44 = scmp.ne.s32.totalorder %s27, %s43
      %p45 = scmp.eq.s32.totalorder %s19, 0
      %p46 = por %p44, %p45
      %s47 = ssub.s32 %s13, %s20
      %p48 = scmp.eq.s32.totalorder %s47, 0
      %s50 = sadd.s32 %s49, 1
      %s51 = scalar_select %p48, %s49, %s50
      %p54 = pneg %p48
      %p55 = scmp.eq.s32.totalorder %s13, 1
      %p56 = por %p54, %p55
      %p57 = scmp.ne.s32.totalorder %s49, %s52
      %p58 = scmp.eq.s32.totalorder %s13, 0
      %p59 = por %p57, %p58
      %p60 = scmp.ne.s32.totalorder %s49, %s52
      %p61 = scmp.eq.s32.totalorder %s18, 1
      %p62 = por %p60, %p61
      %p63 = scmp.ne.s32.totalorder %s52, %s53
      %p64 = scmp.eq.s32.totalorder %s18, 0
      %p65 = por %p63, %p64
      %p66 = scmp.ne.s32.totalorder %s52, %s53
      %p67 = scmp.eq.s32.totalorder %s19, 1
      %p68 = por %p66, %p67
      %p70 = scmp.ne.s32.totalorder %s53, %s69
      %p71 = scmp.eq.s32.totalorder %s19, 0
      %p72 = por %p70, %p71
      %p73 = scmp.le.s32.totalorder 1, %s13
      %p74 = scmp.lt.s32.totalorder %s13, 3
      %p75 = pnand %p73, %p74
      %p76 = pneg %p75
      // Predicated region
      $region9: #{tpu_custom_call.1} parent=5 // pred_check
        _
      $region10: #{tpu_custom_call.1} parent=5 // pred_check_branch
        %78 = sbr.rel (%p75) target = $region12
      $region11: #{tpu_custom_call.1} parent=5 // pred_region
        %s79 = ssub.s32 %s13, 1
      $region12: #{tpu_custom_call.1} parent=5 // pred_fallthru
        _
      %p80 = scmp.lt.s32.totalorder %s13, 2
      // Predicated region
      $region13: #{tpu_custom_call.1} parent=5 // pred_check
        %p81 = pneg %p80
      $region14: #{tpu_custom_call.1} parent=5 // pred_check_branch
        %83 = sbr.rel (%p81) target = $region16
      $region15: #{tpu_custom_call.1} parent=5 // pred_region
        // Predicated region
        $region17: #{tpu_custom_call.1} parent=15 // pred_check
          %p84 = pneg %p33
        $region18: #{tpu_custom_call.1} parent=15 // pred_check_branch
          %86 = sbr.rel (%p84) target = $region20
        $region19: #{tpu_custom_call.1} parent=15 // pred_region
          %s87 = sand.u32 %s23, 1
          %s88 = scalar_lea.sflag [#allocation4], %s87
          %s89 = sand.u32 %s23, 1
          %s90 = smul.addr %s89, 64
          %s91 = scalar_lea.vmem [#allocation3], %s90
          %s93 = ssub.s32 1024, 1024
          %94 = vsyncadd %s88, %s93
          %s95 = smul.addr %s13, 8
          %s96 = smul.addr %s95, 128
          %s97 = scalar_lea.hbm %s0, %s96
          %s98 = sshll.u32 %s91, 4
          %s99 = int_to_ptr.vmem [resolvable:$true] %s98
          %104 = dma.hbm_to_vmem [thread:$0]  %s97, 1024, %s99, %s88, 128, 128, 8
        $region20: #{tpu_custom_call.1} parent=15 // pred_fallthru
          _
      $region16: #{tpu_custom_call.1} parent=5 // pred_fallthru
        _
      %p105 = scmp.le.s32.totalorder 1, %s13
      %p106 = scmp.lt.s32.totalorder %s13, 3
      %p107 = pnand %p105, %p106
      %p108 = pneg %p107
      // Predicated region
      $region21: #{tpu_custom_call.1} parent=5 // pred_check
        _
      $region22: #{tpu_custom_call.1} parent=5 // pred_check_branch
        %110 = sbr.rel (%p107) target = $region24
      $region23: #{tpu_custom_call.1} parent=5 // pred_region
        %s111 = ssub.s32 %s13, 1
        %s112 = sand.u32 %s26, 1
        %s113 = scalar_lea.sflag [#allocation4], %s112
        %s114 = sand.u32 %s26, 1
        %s115 = smul.addr %s114, 64
        %s116 = scalar_lea.vmem [#allocation3], %s115
        // Predicated region
        $region25: #{tpu_custom_call.1} parent=23 // pred_check
          %p117 = pneg %p39
        $region26: #{tpu_custom_call.1} parent=23 // pred_check_branch
          %119 = sbr.rel (%p117) target = $region28
        $region27: #{tpu_custom_call.1} parent=23 // pred_region
          %120 = dma.done %s113, 1024
        $region28: #{tpu_custom_call.1} parent=23 // pred_fallthru
          _
        %s121 = sand.u32 %s26, 1
        %s122 = scalar_lea.sflag [#allocation4], %s121
        %s123 = sand.u32 %s26, 1
        %s124 = smul.addr %s123, 64
        %s125 = scalar_lea.vmem [#allocation3], %s124
        %p126 = pneg %p39
        %p127 = pneg %p36
        %p128 = pneg %p65
        %p129 = pneg %p62
        %s130 = sand.u32 %s52, 1
        %s131 = scalar_lea.sflag [#allocation5], %s130
        %s132 = sand.u32 %s52, 1
        %s133 = smul.addr %s132, 16
        %s134 = scalar_lea.vmem [#allocation6], %s133
        %v135 = vld [vmem:[%s116] sm:$0xff]
        %v136 = vld [vmem:[%s116 + $0x8] sm:$0xff]
        %v137 = vld [vmem:[%s116 + $0x10] sm:$0xff]
        %v138 = vld [vmem:[%s116 + $0x18] sm:$0xff]
        %v139 = vld [vmem:[%s116 + $0x20] sm:$0xff]
        %v140 = vld [vmem:[%s116 + $0x28] sm:$0xff]
        %v141 = vld [vmem:[%s116 + $0x30] sm:$0xff]
        %v142 = vld [vmem:[%s116 + $0x38] sm:$0xff]
        %vm143 = vcmask 130048
        %v144 = vsel %vm143, %v135, 0.0
        %v145 = vsel %vm143, %v137, 0.0
        %v146 = vadd.f32 %v144, %v145
        %v147 = vsel %vm143, %v139, 0.0
        %v148 = vadd.f32 %v146, %v147
        %v149 = vsel %vm143, %v141, 0.0
        %v150 = vadd.f32 %v148, %v149
        %v151 = vsel %vm143, %v136, 0.0
        %v152 = vsel %vm143, %v138, 0.0
        %v153 = vadd.f32 %v151, %v152
        %v154 = vsel %vm143, %v140, 0.0
        %v155 = vadd.f32 %v153, %v154
        %v156 = vsel %vm143, %v142, 0.0
        %v157 = vadd.f32 %v155, %v156
        %vm158 = vcmask 146432
        %159 = vst.msk [vmem:[#allocation2] sm:$0xff] %vm158, 0.0
        %160 = vst.msk [vmem:[#allocation2 + $0x8] sm:$0xff] %vm158, 0.0
        %vm161 = vcmask 140288
        %162 = vst.msk [vmem:[#allocation2 + $0x10] sm:$0x3] %vm161, 0.0
        %165 = vrot.lane.b32.xlu0 %v150, 1
        %v166 = vpop.permute.xlu0 %165
        %167 = vrot.lane.b32.xlu0 %v157, 1
        %v168 = vpop.permute.xlu0 %167
        %vm171 = vcmask 138248
        %172 = vst.msk [vmem:[#allocation2 + $0x1] sm:$0xff] %vm171, %v166
        %173 = vst.msk [vmem:[#allocation2 + $0x9] sm:$0xff] %vm171, %v168
        %v174 = vld [vmem:[#allocation2] sm:$0xff]
        %v175 = vld [vmem:[#allocation2 + $0x8] sm:$0xff]
        %v176 = vld [vmem:[#allocation2 + $0x10] sm:$0x3]
        %180 = vrot.lane.b32.xlu0 %v174, 127
        %v181 = vpop.permute.xlu0 %180
        %182 = vrot.lane.b32.xlu0 %v175, 127
        %v183 = vpop.permute.xlu0 %182
        %184 = vrot.lane.b32.xlu0 %v176, 127
        %v185 = vpop.permute.xlu0 %184
        %v189 = vadd.f32 %v174, %v181
        %v190 = vadd.f32 %v175, %v183
        %v191 = vadd.f32 %v176, %v185
        %192 = vrot.lane.b32.xlu0 %v174, 126
        %v193 = vpop.permute.xlu0 %192
        %194 = vrot.lane.b32.xlu0 %v175, 126
        %v195 = vpop.permute.xlu0 %194
        %196 = vrot.lane.b32.xlu0 %v176, 126
        %v197 = vpop.permute.xlu0 %196
        %v201 = vadd.f32 %v189, %v193
        %v202 = vadd.f32 %v190, %v195
        %v203 = vadd.f32 %v191, %v197
        %vm207 = vcmask 1046528
        %v208 = vrot.slane %v201, 1
        %v209 = vrot.slane %v202, 1
        %v210 = vsel %vm207, %v208, %v209
        %v211 = vrot.slane %v203, 1
        %v212 = vsel %vm207, %v209, %v211
        %v215 = vadd.f32 %v201, %v210
        %v216 = vadd.f32 %v202, %v212
        %vm217 = vcmask 1045504
        %v218 = vrot.slane %v201, 2
        %v219 = vrot.slane %v202, 2
        %v220 = vsel %vm217, %v218, %v219
        %v221 = vrot.slane %v203, 2
        %v222 = vsel %vm217, %v219, %v221
        %v225 = vadd.f32 %v215, %v220
        %v226 = vadd.f32 %v216, %v222
        %vm227 = vcmp.ne.f32.partialorder %v225, 0.0
        %vm228 = vcmp.ne.f32.partialorder %v226, 0.0
        %v229 = vsel %vm227, 1, 0
        %v230 = vsel %vm228, 1, 0
        %v231 = vcvt.s32.f32 %v229
        %v232 = vcvt.s32.f32 %v230
        %233 = vst.msk [vmem:[%s134] sm:$0xff] %vm143, %v231
        %234 = vst.msk [vmem:[%s134 + $0x8] sm:$0xff] %vm143, %v232
        %s235 = sand.u32 %s52, 1
        %s236 = scalar_lea.sflag [#allocation5], %s235
        %s237 = sand.u32 %s52, 1
        %s238 = smul.addr %s237, 16
        %s239 = scalar_lea.vmem [#allocation6], %s238
        // Predicated region
        $region29: #{tpu_custom_call.1} parent=23 // pred_check
          %p240 = pneg %p62
        $region30: #{tpu_custom_call.1} parent=23 // pred_check_branch
          %242 = sbr.rel (%p240) target = $region32
        $region31: #{tpu_custom_call.1} parent=23 // pred_region
          %s244 = ssub.s32 256, 256
          %245 = vsyncadd %s236, %s244
          %s246 = smul.addr %s18, 2
          %s247 = smul.addr %s246, 128
          %s248 = scalar_lea.hbm %s1, %s247
          %s249 = sshll.u32 %s239, 4
          %s250 = int_to_ptr.vmem [resolvable:$true] %s249
          %255 = dma.vmem_to_hbm [thread:$0]  %s250, 256, %s248, %s236, 128, 128, 8
        $region32: #{tpu_custom_call.1} parent=23 // pred_fallthru
          _
      $region24: #{tpu_custom_call.1} parent=5 // pred_fallthru
        _
      %p256 = scmp.le.s32.totalorder 2, %s13
      // Predicated region
      $region33: #{tpu_custom_call.1} parent=5 // pred_check
        %p257 = pneg %p256
      $region34: #{tpu_custom_call.1} parent=5 // pred_check_branch
        %259 = sbr.rel (%p257) target = $region36
      $region35: #{tpu_custom_call.1} parent=5 // pred_region
        %s260 = ssub.s32 %s13, 2
        // Predicated region
        $region37: #{tpu_custom_call.1} parent=35 // pred_check
          %p261 = pneg %p68
        $region38: #{tpu_custom_call.1} parent=35 // pred_check_branch
          %263 = sbr.rel (%p261) target = $region40
        $region39: #{tpu_custom_call.1} parent=35 // pred_region
          %s264 = sand.u32 %s53, 1
          %s265 = scalar_lea.sflag [#allocation5], %s264
          %s266 = sand.u32 %s53, 1
          %s267 = smul.addr %s266, 16
          %s268 = scalar_lea.vmem [#allocation6], %s267
          %269 = dma.done %s265, 256
        $region40: #{tpu_custom_call.1} parent=35 // pred_fallthru
          _
      $region36: #{tpu_custom_call.1} parent=5 // pred_fallthru
        _
    $region6: #{tpu_custom_call.1} parent=1 // loop_footer
      %s17 = sadd.s32 1, %s13
    $region7: #{tpu_custom_call.1} parent=1 // loop_footer_branch
      %12 = sbr.rel target = $region3
    $region8: #{tpu_custom_call.1} parent=1 // loop_exit
      _
    %270 = vsyncpa [#allocation4], 1
    %s271 = scalar_lea.sflag [#allocation4], 1
    %272 = vsyncpa %s271, 1
    %273 = vsyncpa [#allocation5], 1
    %s274 = scalar_lea.sflag [#allocation5], 1
    %275 = vsyncpa %s274, 1

</llo_original>
